<compile_context>
chip_gen: v7x
topology: tpu7x:2x2x1
jax: 0.10.0
libtpu: 0.0.40
codegen_flags: <defaults>
</compile_context>

<pallas_src>
import functools

import jax
import jax.numpy as jnp
import numpy as np
from jax.experimental import pallas as pl
from jax.experimental.pallas import tpu as pltpu


def _round_up(a, m):
    return (a + m - 1) // m * m


def cosine_classifier_kernel(x_ref, w_ref, invw_ref, o_ref):
    # x_ref:    (TB, C_pad)   input rows
    # w_ref:    (TN, C_pad)   class weight rows (PyTorch layout, NOT transposed)
    # invw_ref: (TN, 1)       f32, scale_cls / ||w_class||  (precomputed)
    # o_ref:    (TB, TN)
    x = x_ref[...].astype(jnp.float32)

    # F.normalize(x, p=2, dim=1, eps=1e-12)  ==  x * rsqrt(max(sum x^2, 1e-24))
    inv_x = jax.lax.rsqrt(
        jnp.maximum(jnp.sum(x * x, axis=1, keepdims=True), 1e-24))
    x_n = (x * inv_x).astype(x_ref.dtype)

    # Per-class normalization (+ class scale) folded into one VPU multiply.
    w_n = (w_ref[...].astype(jnp.float32) * invw_ref[...]).astype(w_ref.dtype)

    # x_n @ w_n.T on the MXU, f32 accumulation.
    out = jax.lax.dot_general(
        x_n, w_n,
        dimension_numbers=(((1,), (1,)), ((), ())),
        preferred_element_type=jnp.float32)
    o_ref[...] = out.astype(o_ref.dtype)


def cosine_classifier_forward(x_in, weight, scale_cls, bias=None,
                              normalize_x=True, normalize_w=True,
                              tb_max=256, tn_max=256):
    """x_in: [B, C], weight: [num_classes, C] (PyTorch layout), scale_cls: [1]."""
    assert x_in.ndim == 2 and weight.ndim == 2
    B, C = x_in.shape
    NC, C_w = weight.shape
    assert C_w == C
    # TODO(synk): normalize_x/normalize_w=False and bias!=None variants of the
    #             module are not implemented in this kernel.
    assert normalize_x and normalize_w and bias is None

    # MXU/lane-aligned tile sizes (multiples of 8 / 128; capped at 256).
    TB = min(tb_max, _round_up(max(B, 8), 8))
    TN = min(tn_max, _round_up(max(NC, 128), 128))
    B_pad = _round_up(B, TB)
    NC_pad = _round_up(NC, TN)
    C_pad = _round_up(C, 128)

    xp = x_in
    if (B_pad, C_pad) != (B, C):
        xp = jnp.pad(x_in, ((0, B_pad - B), (0, C_pad - C)))
    wp = weight
    if (NC_pad, C_pad) != (NC, C):
        wp = jnp.pad(weight, ((0, NC_pad - NC), (0, C_pad - C)))

    # Batch-invariant per-class inverse L2 norms with the class scale folded in
    # (computed once; padded classes have sumsq=0 -> clamped -> w_n = 0).
    wf = wp.astype(jnp.float32)
    w_sumsq = jnp.sum(wf * wf, axis=1, keepdims=True)              # [NC_pad, 1]
    inv_w = (jax.lax.rsqrt(jnp.maximum(w_sumsq, 1e-24))
             * scale_cls.reshape(1, 1).astype(jnp.float32))

    grid = (B_pad // TB, NC_pad // TN)

    # VMEM budget: 2x double-buffered inputs + 2x output tile, with margin.
    tile_bytes = 4 * (2 * (TB * C_pad + TN * C_pad + TN) + 2 * TB * TN)
    vmem_limit = int(min(64 * 2 ** 20, max(32 * 2 ** 20, 2 * tile_bytes)))

    cost = pl.CostEstimate(
        flops=2 * B_pad * C_pad * NC_pad,
        transcendentals=B_pad + NC_pad,
        bytes_accessed=4 * (B_pad * C_pad + NC_pad * C_pad + B_pad * NC_pad),
    )

    out_p = pl.pallas_call(
        cosine_classifier_kernel,
        out_shape=jax.ShapeDtypeStruct((B_pad, NC_pad), x_in.dtype),
        grid=grid,
        in_specs=[
            pl.BlockSpec((TB, C_pad), lambda i, j: (i, 0)),   # x rows
            pl.BlockSpec((TN, C_pad), lambda i, j: (j, 0)),   # weight rows
            pl.BlockSpec((TN, 1), lambda i, j: (j, 0)),       # scaled inv norms
        ],
        out_specs=pl.BlockSpec((TB, TN), lambda i, j: (i, j)),
        compiler_params=pltpu.CompilerParams(
            dimension_semantics=("parallel", "parallel"),
            vmem_limit_bytes=vmem_limit),
        cost_estimate=cost,
    )(xp, wp, inv_w)

    return out_p[:B, :NC]


def _reference(x_in, weight, scale_cls):
    # Mirrors torch: F.normalize(x, dim=1), F.normalize(weight.t(), dim=0),
    # mm, * scale.view(1, -1).
    x_n = x_in / jnp.maximum(
        jnp.linalg.norm(x_in, axis=1, keepdims=True), 1e-12)
    w_t = weight.T
    w_n = w_t / jnp.maximum(
        jnp.linalg.norm(w_t, axis=0, keepdims=True), 1e-12)
    return (x_n @ w_n) * scale_cls.reshape(1, -1)


if __name__ == "__main__":
    key = jax.random.PRNGKey(0)
    k1, k2 = jax.random.split(key)

    batch = 8
    num_channels = 32
    num_classes = 16
    scale = 10.0

    # deterministic "parameters" mirroring torch init:
    #   weight ~ N(0, sqrt(2/num_channels)), shape [num_classes, num_channels]
    weight = (jax.random.normal(k1, (num_classes, num_channels), jnp.float32)
              * np.sqrt(2.0 / num_channels))
    scale_cls = jnp.full((1,), scale, jnp.float32)

    x_in = jax.random.normal(k2, (batch, num_channels), jnp.float32)

    out = cosine_classifier_forward(x_in, weight, scale_cls)
    out = jax.block_until_ready(out)

    ref = _reference(x_in, weight, scale_cls)
    assert out.shape == (batch, num_classes)
    np.testing.assert_allclose(np.asarray(out), np.asarray(ref),
                               rtol=1e-5, atol=1e-5)
    print("KERNEL_OK")
</pallas_src>

<mosaic_0001>
module attributes {stable_mosaic.version = 11 : i64} {
  func.func @cosine_classifier_kernel(%arg0: i32, %arg1: i32, %arg2: memref<8x128xf32, #tpu.memory_space<vmem>>, %arg3: memref<128x128xf32, #tpu.memory_space<vmem>>, %arg4: memref<128x1xf32, #tpu.memory_space<vmem>>, %arg5: memref<8x128xf32, #tpu.memory_space<vmem>>) attributes {dimension_semantics = [#tpu.dimension_semantics<parallel>, #tpu.dimension_semantics<parallel>], iteration_bounds = array<i64: 1, 1>, scalar_prefetch = 0 : i64, scratch_operands = 0 : i64, tpu.core_type = #tpu.core_type<tc>, window_params = [{transform_indices = @transform_0, window_bounds = array<i64: 8, 128>}, {transform_indices = @transform_1, window_bounds = array<i64: 128, 128>}, {transform_indices = @transform_2, window_bounds = array<i64: 128, 1>}, {transform_indices = @transform_3, window_bounds = array<i64: 8, 128>}]} {
    %c0 = arith.constant 0 : index
    %c0_0 = arith.constant 0 : index
    %0 = vector.load %arg2[%c0, %c0_0] : memref<8x128xf32, #tpu.memory_space<vmem>>, vector<8x128xf32>
    %1 = arith.mulf %0, %0 : vector<8x128xf32>
    %cst = arith.constant dense<0.000000e+00> : vector<8xf32>
    %2 = vector.multi_reduction <add>, %1, %cst [1] : vector<8x128xf32> to vector<8xf32>
    %3 = vector.shape_cast %2 : vector<8xf32> to vector<8x1xf32>
    %cst_1 = arith.constant 1.000000e-24 : f32
    %4 = vector.broadcast %cst_1 : f32 to vector<8x1xf32>
    %5 = arith.maximumf %3, %4 : vector<8x1xf32>
    %6 = math.rsqrt %5 : vector<8x1xf32>
    %7 = vector.broadcast %6 : vector<8x1xf32> to vector<8x128xf32>
    %8 = arith.mulf %0, %7 : vector<8x128xf32>
    %c0_2 = arith.constant 0 : index
    %c0_3 = arith.constant 0 : index
    %9 = vector.load %arg3[%c0_2, %c0_3] : memref<128x128xf32, #tpu.memory_space<vmem>>, vector<128x128xf32>
    %c0_4 = arith.constant 0 : index
    %c0_5 = arith.constant 0 : index
    %10 = vector.load %arg4[%c0_4, %c0_5] : memref<128x1xf32, #tpu.memory_space<vmem>>, vector<128x1xf32>
    %11 = vector.broadcast %10 : vector<128x1xf32> to vector<128x128xf32>
    %12 = arith.mulf %9, %11 : vector<128x128xf32>
    %cst_6 = arith.constant dense<0.000000e+00> : vector<8x128xf32>
    %13 = tpu.matmul %8, %12, %cst_6 {dimension_numbers = #tpu.dot_dimension_numbers<[1], [1], [0], [0], [0, 0, 1, 0], [], []>} : vector<8x128xf32>, vector<128x128xf32>, vector<8x128xf32> -> vector<8x128xf32>
    %c0_7 = arith.constant 0 : index
    %c0_8 = arith.constant 0 : index
    %14 = vector.load %arg5[%c0_7, %c0_8] : memref<8x128xf32, #tpu.memory_space<vmem>>, vector<8x128xf32>
    tpu.vector_store %arg5[%c0_7, %c0_8], %13 {strides = array<i32>} : memref<8x128xf32, #tpu.memory_space<vmem>>, vector<8x128xf32>,
    return
  }
  func.func @transform_0(%arg0: i32, %arg1: i32) -> (i32, i32) {
    %c0_i32 = arith.constant 0 : i32
    %c0_i32_0 = arith.constant 0 : i32
    return %arg0, %c0_i32 : i32, i32
  }
  func.func @transform_1(%arg0: i32, %arg1: i32) -> (i32, i32) {
    %c0_i32 = arith.constant 0 : i32
    %c0_i32_0 = arith.constant 0 : i32
    return %arg1, %c0_i32 : i32, i32
  }
  func.func @transform_2(%arg0: i32, %arg1: i32) -> (i32, i32) {
    %c0_i32 = arith.constant 0 : i32
    %c0_i32_0 = arith.constant 0 : i32
    return %arg1, %c0_i32 : i32, i32
  }
  func.func @transform_3(%arg0: i32, %arg1: i32) -> (i32, i32) {
    %c0_i32 = arith.constant 0 : i32
    return %arg0, %arg1 : i32, i32
  }
}

</mosaic_0001>

<llo_original>
// kernel: tpu_custom_call.1
$region0: #{tpu_custom_call.1}
  #allocation0 [shape = 'u32[]', space=smem, size = 0x4, offset = 0x4, fixed_abs, tag = 'smem constant byte address 0x4 - core index']
  #allocation1 [shape = 'u32[144,128]{1,0:T(1,128)}', space=vmem, size = 0x12000, scoped, tag = 'internal scratch']
  %s0 = inlined_call_operand.hbm [shape: f32[8,128], index: 0, kind: input, shape index: {}]
  %s1 = inlined_call_operand.vmem [shape: f32[128,128], index: 1, kind: input, shape index: {}]
  %s2 = inlined_call_operand.vmem [shape: f32[128,1], index: 2, kind: input, shape index: {}]
  %s3 = inlined_call_operand.hbm [shape: f32[8,128], index: 3, kind: output, shape index: {}]
  %s4 = sld [smem:[#allocation0]]
  $region26: #{tpu_custom_call.1} parent=0
    _
  %s6 = ssub.s32 1, %s4
  %s7 = scalar_select 0, %s6, %s4
  $region1: #{tpu_custom_call.1} parent=0
    #allocation2 [shape = 'u8[4096]{0}', space=vmem, size = 0x1000, scoped, tag = 'input window, operand 0, single buffered']
    #allocation3 [shape = 's32[1]{0}', space=sflag, size = 0x4, scoped, tag = 'scoped memory for tpu_custom_call.1']
    #allocation4 [shape = 's32[1]{0}', space=sflag, size = 0x4, scoped, tag = 'scoped memory for tpu_custom_call.1']
    #allocation5 [shape = 'u8[4096]{0}', space=vmem, size = 0x1000, scoped, tag = 'output window, operand 0, single buffered']
    %8 = vsyncpa [#allocation3], 0
    %9 = vsyncpa [#allocation4], 0
    // Predicated region
    $region2: #{tpu_custom_call.1} parent=1 // pred_check
      _
    $region3: #{tpu_custom_call.1} parent=1 // pred_check_branch
      %11 = sbr.rel (0) target = $region5
    $region4: #{tpu_custom_call.1} parent=1 // pred_region
      %s13 = ssub.s32 128, 128
      %14 = vsyncadd [#allocation3], %s13
      %s16 = sshll.u32 [#allocation2], 4
      %s17 = int_to_ptr.vmem [resolvable:$true] %s16
      %19 = dma.hbm_to_vmem [thread:$0]  %s0, 128, %s17, [#allocation3]
    $region5: #{tpu_custom_call.1} parent=1 // pred_fallthru
      _
    // Predicated region
    $region6: #{tpu_custom_call.1} parent=1 // pred_check
      _
    $region7: #{tpu_custom_call.1} parent=1 // pred_check_branch
      %21 = sbr.rel (0) target = $region9
    $region8: #{tpu_custom_call.1} parent=1 // pred_region
      _
    $region9: #{tpu_custom_call.1} parent=1 // pred_fallthru
      _
    // Predicated region
    $region10: #{tpu_custom_call.1} parent=1 // pred_check
      _
    $region11: #{tpu_custom_call.1} parent=1 // pred_check_branch
      %23 = sbr.rel (0) target = $region13
    $region12: #{tpu_custom_call.1} parent=1 // pred_region
      _
    $region13: #{tpu_custom_call.1} parent=1 // pred_fallthru
      _
    // Predicated region
    $region14: #{tpu_custom_call.1} parent=1 // pred_check
      _
    $region15: #{tpu_custom_call.1} parent=1 // pred_check_branch
      %25 = sbr.rel (0) target = $region17
    $region16: #{tpu_custom_call.1} parent=1 // pred_region
      %26 = dma.done [#allocation3], 128
    $region17: #{tpu_custom_call.1} parent=1 // pred_fallthru
      _
    %v27 = vld [vmem:[#allocation2] sm:$0xff]
    %v28 = vmul.f32 %v27, %v27
    %29 = vadd.xlane.f32.xlu0 %v28
    %v30 = vpop.xlane.xlu0 %29
    %v31 = vmax.f32 %v30, 1e-24
    %v32 = vrsqrt.pop %v31
    %v33 = vmul.f32 %v27, %v32
    %v34 = vld [vmem:[%s1] sm:$0xff]
    %v35 = vld [vmem:[%s1 + $0x8] sm:$0xff]
    %v36 = vld [vmem:[%s1 + $0x10] sm:$0xff]
    %v37 = vld [vmem:[%s1 + $0x18] sm:$0xff]
    %v38 = vld [vmem:[%s1 + $0x20] sm:$0xff]
    %v39 = vld [vmem:[%s1 + $0x28] sm:$0xff]
    %v40 = vld [vmem:[%s1 + $0x30] sm:$0xff]
    %v41 = vld [vmem:[%s1 + $0x38] sm:$0xff]
    %v42 = vld [vmem:[%s1 + $0x40] sm:$0xff]
    %v43 = vld [vmem:[%s1 + $0x48] sm:$0xff]
    %v44 = vld [vmem:[%s1 + $0x50] sm:$0xff]
    %v45 = vld [vmem:[%s1 + $0x58] sm:$0xff]
    %v46 = vld [vmem:[%s1 + $0x60] sm:$0xff]
    %v47 = vld [vmem:[%s1 + $0x68] sm:$0xff]
    %v48 = vld [vmem:[%s1 + $0x70] sm:$0xff]
    %v49 = vld [vmem:[%s1 + $0x78] sm:$0xff]
    %v50 = vld [vmem:[%s2] sm:$0xff]
    %v51 = vld [vmem:[%s2 + $0x8] sm:$0xff]
    %v52 = vld [vmem:[%s2 + $0x10] sm:$0xff]
    %v53 = vld [vmem:[%s2 + $0x18] sm:$0xff]
    %v54 = vld [vmem:[%s2 + $0x20] sm:$0xff]
    %v55 = vld [vmem:[%s2 + $0x28] sm:$0xff]
    %v56 = vld [vmem:[%s2 + $0x30] sm:$0xff]
    %v57 = vld [vmem:[%s2 + $0x38] sm:$0xff]
    %v58 = vld [vmem:[%s2 + $0x40] sm:$0xff]
    %v59 = vld [vmem:[%s2 + $0x48] sm:$0xff]
    %v60 = vld [vmem:[%s2 + $0x50] sm:$0xff]
    %v61 = vld [vmem:[%s2 + $0x58] sm:$0xff]
    %v62 = vld [vmem:[%s2 + $0x60] sm:$0xff]
    %v63 = vld [vmem:[%s2 + $0x68] sm:$0xff]
    %v64 = vld [vmem:[%s2 + $0x70] sm:$0xff]
    %v65 = vld [vmem:[%s2 + $0x78] sm:$0xff]
    %67 = vset.pattern.permute.xlu0 0
    %68 = vperm.xlu0 %67, %v50
    %v69 = vpop.permute.xlu0 %68
    %72 = vset.pattern.permute.xlu0 0
    %73 = vperm.xlu0 %72, %v51
    %v74 = vpop.permute.xlu0 %73
    %77 = vset.pattern.permute.xlu0 0
    %78 = vperm.xlu0 %77, %v52
    %v79 = vpop.permute.xlu0 %78
    %82 = vset.pattern.permute.xlu0 0
    %83 = vperm.xlu0 %82, %v53
    %v84 = vpop.permute.xlu0 %83
    %87 = vset.pattern.permute.xlu0 0
    %88 = vperm.xlu0 %87, %v54
    %v89 = vpop.permute.xlu0 %88
    %92 = vset.pattern.permute.xlu0 0
    %93 = vperm.xlu0 %92, %v55
    %v94 = vpop.permute.xlu0 %93
    %97 = vset.pattern.permute.xlu0 0
    %98 = vperm.xlu0 %97, %v56
    %v99 = vpop.permute.xlu0 %98
    %102 = vset.pattern.permute.xlu0 0
    %103 = vperm.xlu0 %102, %v57
    %v104 = vpop.permute.xlu0 %103
    %107 = vset.pattern.permute.xlu0 0
    %108 = vperm.xlu0 %107, %v58
    %v109 = vpop.permute.xlu0 %108
    %112 = vset.pattern.permute.xlu0 0
    %113 = vperm.xlu0 %112, %v59
    %v114 = vpop.permute.xlu0 %113
    %117 = vset.pattern.permute.xlu0 0
    %118 = vperm.xlu0 %117, %v60
    %v119 = vpop.permute.xlu0 %118
    %122 = vset.pattern.permute.xlu0 0
    %123 = vperm.xlu0 %122, %v61
    %v124 = vpop.permute.xlu0 %123
    %127 = vset.pattern.permute.xlu0 0
    %128 = vperm.xlu0 %127, %v62
    %v129 = vpop.permute.xlu0 %128
    %132 = vset.pattern.permute.xlu0 0
    %133 = vperm.xlu0 %132, %v63
    %v134 = vpop.permute.xlu0 %133
    %137 = vset.pattern.permute.xlu0 0
    %138 = vperm.xlu0 %137, %v64
    %v139 = vpop.permute.xlu0 %138
    %142 = vset.pattern.permute.xlu0 0
    %143 = vperm.xlu0 %142, %v65
    %v144 = vpop.permute.xlu0 %143
    %v146 = vmul.f32 %v34, %v69
    %v147 = vmul.f32 %v35, %v74
    %v148 = vmul.f32 %v36, %v79
    %v149 = vmul.f32 %v37, %v84
    %v150 = vmul.f32 %v38, %v89
    %v151 = vmul.f32 %v39, %v94
    %v152 = vmul.f32 %v40, %v99
    %v153 = vmul.f32 %v41, %v104
    %v154 = vmul.f32 %v42, %v109
    %v155 = vmul.f32 %v43, %v114
    %v156 = vmul.f32 %v44, %v119
    %v157 = vmul.f32 %v45, %v124
    %v158 = vmul.f32 %v46, %v129
    %v159 = vmul.f32 %v47, %v134
    %v160 = vmul.f32 %v48, %v139
    %v161 = vmul.f32 %v49, %v144
    %162 = vmatprep.subr.mxu0 0.0
    %163 = vmatpush1.xpose.msra.mxu0 %v146
    %164 = vmatprep.subr.mxu0 0.0
    %165 = vmatpush1.xpose.msra.mxu0 %v147
    %166 = vmatprep.subr.mxu0 0.0
    %167 = vmatpush1.xpose.msra.mxu0 %v148
    %168 = vmatprep.subr.mxu0 0.0
    %169 = vmatpush1.xpose.msra.mxu0 %v149
    %170 = vmatprep.subr.mxu0 0.0
    %171 = vmatpush1.xpose.msra.mxu0 %v150
    %172 = vmatprep.subr.mxu0 0.0
    %173 = vmatpush1.xpose.msra.mxu0 %v151
    %174 = vmatprep.subr.mxu0 0.0
    %175 = vmatpush1.xpose.msra.mxu0 %v152
    %176 = vmatprep.subr.mxu0 0.0
    %177 = vmatpush1.xpose.msra.mxu0 %v153
    %178 = vmatprep.subr.mxu0 0.0
    %179 = vmatpush1.xpose.msra.mxu0 %v154
    %180 = vmatprep.subr.mxu0 0.0
    %181 = vmatpush1.xpose.msra.mxu0 %v155
    %182 = vmatprep.subr.mxu0 0.0
    %183 = vmatpush1.xpose.msra.mxu0 %v156
    %184 = vmatprep.subr.mxu0 0.0
    %185 = vmatpush1.xpose.msra.mxu0 %v157
    %186 = vmatprep.subr.mxu0 0.0
    %187 = vmatpush1.xpose.msra.mxu0 %v158
    %188 = vmatprep.subr.mxu0 0.0
    %189 = vmatpush1.xpose.msra.mxu0 %v159
    %190 = vmatprep.subr.mxu0 0.0
    %191 = vmatpush1.xpose.msra.mxu0 %v160
    %192 = vmatprep.subr.mxu0 0.0
    %193 = vmatpush1.xpose.msra.mxu0 %v161
    %194 = vmatprep.subr.mxu0 0.0
    %195 = vmatpush1.xpose.msra.mxu0 0.0
    %196 = vmatprep.subr.mxu0 0.0
    %197 = vmatpush1.xpose.msra.mxu0 0.0
    %198 = vmatprep.subr.mxu0 0.0
    %199 = vmatpush1.xpose.msra.mxu0 0.0
    %200 = vmatprep.subr.mxu0 0.0
    %201 = vmatpush1.xpose.msra.mxu0 0.0
    %202 = vmatprep.subr.mxu0 0.0
    %203 = vmatpush1.xpose.msra.mxu0 0.0
    %204 = vmatprep.subr.mxu0 0.0
    %205 = vmatpush1.xpose.msra.mxu0 0.0
    %206 = vmatprep.subr.mxu0 0.0
    %207 = vmatpush1.xpose.msra.mxu0 0.0
    %208 = vmatprep.subr.mxu0 0.0
    %209 = vmatpush1.xpose.msra.mxu0 0.0
    %210 = vmatprep.subr.mxu0 0.0
    %211 = vmatpush1.xpose.msra.mxu0 0.0
    %212 = vmatprep.subr.mxu0 0.0
    %213 = vmatpush1.xpose.msra.mxu0 0.0
    %214 = vmatprep.subr.mxu0 0.0
    %215 = vmatpush1.xpose.msra.mxu0 0.0
    %216 = vmatprep.subr.mxu0 0.0
    %217 = vmatpush1.xpose.msra.mxu0 0.0
    %218 = vmatprep.subr.mxu0 0.0
    %219 = vmatpush1.xpose.msra.mxu0 0.0
    %220 = vmatprep.subr.mxu0 0.0
    %221 = vmatpush1.xpose.msra.mxu0 0.0
    %222 = vmatprep.subr.mxu0 0.0
    %223 = vmatpush1.xpose.msra.mxu0 0.0
    %224 = vmatprep.subr.mxu0 0.0
    %225 = vmatpush1.xpose.msra.mxu0 0.0
    %226 = vmatprep.mubr.f32.mxu0 0.0
    %227 = vmatmul.mubr.f32.gmra.mrb[0].mxu0 %v33
    %v228 = vpop.f32.mrb[0].mxu0
    %v229 = vadd.f32 0.0, %v228
    %v230 = vpop.f32.mrb[0].mxu0
    %231 = vdwg.mxu0
    %232 = vst [vmem:[#allocation5] sm:$0xff] %v229
    // Predicated region
    $region18: #{tpu_custom_call.1} parent=1 // pred_check
      _
    $region19: #{tpu_custom_call.1} parent=1 // pred_check_branch
      %234 = sbr.rel (0) target = $region21
    $region20: #{tpu_custom_call.1} parent=1 // pred_region
      %s236 = ssub.s32 128, 128
      %237 = vsyncadd [#allocation4], %s236
      %s239 = sshll.u32 [#allocation5], 4
      %s240 = int_to_ptr.vmem [resolvable:$true] %s239
      %242 = dma.vmem_to_hbm [thread:$0]  %s240, 128, %s3, [#allocation4]
    $region21: #{tpu_custom_call.1} parent=1 // pred_fallthru
      _
    // Predicated region
    $region22: #{tpu_custom_call.1} parent=1 // pred_check
      _
    $region23: #{tpu_custom_call.1} parent=1 // pred_check_branch
      %244 = sbr.rel (0) target = $region25
    $region24: #{tpu_custom_call.1} parent=1 // pred_region
      %245 = dma.done [#allocation4], 128
    $region25: #{tpu_custom_call.1} parent=1 // pred_fallthru
      _
    %246 = vsyncpa [#allocation3], 1
    %247 = vsyncpa [#allocation4], 1

</llo_original>
